<compile_context>
chip_gen: v6e
topology: v6e:2x2x1
jax: 0.10.0
libtpu: 0.0.40
codegen_flags: <defaults>
</compile_context>

<pallas_src>
import functools

import jax
import jax.numpy as jnp
from jax.experimental import pallas as pl
from jax.experimental.pallas import tpu as pltpu


def _gnn_kernel_reorder(feat_ref, w_ref, adj_ref, out_ref, acc_ref, *, active):
    """acc += adj_tile @ feat_tile over k; final step: tanh(acc @ W)."""
    k = pl.program_id(1)

    @pl.when(k == 0)
    def _init():
        acc_ref[...] = jnp.zeros_like(acc_ref)

    # Dominant N^2 contraction: bf16 operands, f32 accumulation on the MXU.
    acc_ref[...] += jnp.dot(adj_ref[...], feat_ref[...],
                            preferred_element_type=jnp.float32)

    @pl.when(k == pl.num_programs(1) - 1)
    def _finalize():
        # Small (tm, in_f) x (in_f, out_f) matmul once per row tile, in f32.
        out = jnp.dot(acc_ref[...], w_ref[...],
                      preferred_element_type=jnp.float32)
        if active:
            out = jnp.tanh(out)                 # EUP transcendental
        out_ref[...] = out.astype(out_ref.dtype)


def _gnn_kernel_origorder(feat_ref, w_ref, adj_ref, out_ref, acc_ref, *, active):
    """acc += adj_tile @ (feat_tile @ W) over k; final step: tanh(acc).

    Used when in_features > out_features (accumulator stays in the smaller
    out_features space)."""
    k = pl.program_id(1)

    @pl.when(k == 0)
    def _init():
        acc_ref[...] = jnp.zeros_like(acc_ref)

    support = jnp.dot(feat_ref[...], w_ref[...],
                      preferred_element_type=jnp.float32)
    acc_ref[...] += jnp.dot(adj_ref[...], support.astype(adj_ref.dtype),
                            preferred_element_type=jnp.float32)

    @pl.when(k == pl.num_programs(1) - 1)
    def _finalize():
        out = acc_ref[...]
        if active:
            out = jnp.tanh(out)
        out_ref[...] = out.astype(out_ref.dtype)


def _pick_tile(n, target, align):
    """Largest multiple of `align` that divides n and is <= target; else n."""
    t = min(target, n)
    t = (t // align) * align
    while t >= align:
        if n % t == 0:
            return t
        t -= align
    return n  # full dimension is always a legal block shape


def gnn_layer(features, adj, weight, active=True, *,
              tm_target=256, tk_target=256, compute_dtype=jnp.bfloat16):
    """Pallas implementation of GNNLayer.forward."""
    n, in_f = features.shape
    in_f2, out_f = weight.shape
    assert in_f == in_f2
    assert adj.shape == (n, n)
    out_dtype = features.dtype

    tm = _pick_tile(n, tm_target, 8)      # output-row tile (sublane aligned)
    tk = _pick_tile(n, tk_target, 128)    # adj-contraction tile (lane aligned)
    grid = (n // tm, n // tk)             # reduction axis (k) last

    # Reorder to (adj @ features) @ W when out_f >= in_f so the dominant N^2
    # matmul contracts over min(in_f, out_f).
    reorder = out_f >= in_f

    # bf16 operands for the MXU; accumulation stays f32.
    feat_c = features.astype(compute_dtype)
    adj_c = adj.astype(compute_dtype)
    if reorder:
        kernel = functools.partial(_gnn_kernel_reorder, active=active)
        w_c = weight                      # final small matmul stays f32
        acc_cols = in_f
        flops = 2 * n * n * in_f + 2 * n * in_f * out_f
    else:
        kernel = functools.partial(_gnn_kernel_origorder, active=active)
        w_c = weight.astype(compute_dtype)
        acc_cols = out_f
        flops = 2 * n * n * out_f + grid[0] * 2 * n * in_f * out_f

    bytes_accessed = (adj_c.size * adj_c.dtype.itemsize
                      + feat_c.size * feat_c.dtype.itemsize
                      + w_c.size * w_c.dtype.itemsize
                      + n * out_f * jnp.dtype(out_dtype).itemsize)
    cost = pl.CostEstimate(
        flops=flops,
        transcendentals=(n * out_f) if active else 0,
        bytes_accessed=bytes_accessed)

    grid_spec = pltpu.PrefetchScalarGridSpec(
        num_scalar_prefetch=0,
        grid=grid,
        in_specs=[
            pl.BlockSpec((tk, in_f), lambda i, k: (k, 0)),     # features
            pl.BlockSpec((in_f, out_f), lambda i, k: (0, 0)),  # weight
            pl.BlockSpec((tm, tk), lambda i, k: (i, k)),       # adj
        ],
        # Output block ignores k -> accumulator/result stays VMEM-resident
        # across the whole reduction; (tm, out_f) is lane-dense (out_f % 128).
        out_specs=pl.BlockSpec((tm, out_f), lambda i, k: (i, 0)),
        scratch_shapes=[pltpu.VMEM((tm, acc_cols), jnp.float32)],
    )

    return pl.pallas_call(
        kernel,
        out_shape=jax.ShapeDtypeStruct((n, out_f), out_dtype),
        grid_spec=grid_spec,
        compiler_params=pltpu.CompilerParams(
            dimension_semantics=("parallel", "arbitrary"),
        ),
        cost_estimate=cost,
    )(feat_c, w_c, adj_c)


def xavier_uniform(key, in_features, out_features, dtype=jnp.float32):
    """torch.nn.init.xavier_uniform_ equivalent (gain=1)."""
    bound = (6.0 / (in_features + out_features)) ** 0.5
    return jax.random.uniform(
        key, (in_features, out_features), dtype=dtype,
        minval=-bound, maxval=bound)


if __name__ == "__main__":
    # N nodes, in/out feature dims. N=512 so the (tm, tk) tiling is exercised
    # (grid = (2, 2) with the default 256x256 tiles).
    N, IN_F, OUT_F = 512, 64, 128

    key = jax.random.PRNGKey(0)
    k_feat, k_adj, k_w = jax.random.split(key, 3)

    features = jax.random.normal(k_feat, (N, IN_F), dtype=jnp.float32)
    # Symmetric, roughly row-normalized adjacency (values only matter for numerics).
    adj_raw = jax.random.uniform(k_adj, (N, N), dtype=jnp.float32)
    adj = (adj_raw + adj_raw.T) / (2.0 * N)

    weight = xavier_uniform(k_w, IN_F, OUT_F)

    out = gnn_layer(features, adj, weight, active=True)
    out = jax.block_until_ready(out)

    # Pure-JAX f32 reference (kernel uses bf16 MXU operands -> relaxed tol).
    ref = jnp.tanh(adj @ (features @ weight))
    assert out.shape == (N, OUT_F)
    assert jnp.allclose(out, ref, atol=1e-2, rtol=1e-2), "mismatch vs reference"

    print("KERNEL_OK")
</pallas_src>

<mosaic_0001>
module attributes {stable_mosaic.version = 11 : i64} {
  func.func @_gnn_kernel_reorder(%arg0: i32, %arg1: i32, %arg2: memref<256x64xbf16, #tpu.memory_space<vmem>>, %arg3: memref<64x128xf32, #tpu.memory_space<vmem>>, %arg4: memref<256x256xbf16, #tpu.memory_space<vmem>>, %arg5: memref<256x128xf32, #tpu.memory_space<vmem>>, %arg6: memref<256x64xf32, #tpu.memory_space<vmem>>) attributes {dimension_semantics = [#tpu.dimension_semantics<parallel>, #tpu.dimension_semantics<arbitrary>], iteration_bounds = array<i64: 2, 2>, scalar_prefetch = 0 : i64, scratch_operands = 1 : i64, tpu.core_type = #tpu.core_type<tc>, window_params = [{transform_indices = @transform_0, window_bounds = array<i64: 256, 64>}, {pipeline_mode = #tpu.pipeline_mode<synchronous>, transform_indices = @transform_1, window_bounds = array<i64: 64, 128>}, {transform_indices = @transform_2, window_bounds = array<i64: 256, 256>}, {transform_indices = @transform_3, window_bounds = array<i64: 256, 128>}]} {
    %c0_i32 = arith.constant 0 : i32
    %0 = arith.cmpi eq, %arg1, %c0_i32 : i32
    %1 = arith.extui %0 : i1 to i32
    %c0_i32_0 = arith.constant 0 : i32
    %2 = arith.cmpi ne, %1, %c0_i32_0 : i32
    scf.if %2 {
      %cst_9 = arith.constant 0.000000e+00 : f32
      %12 = vector.broadcast %cst_9 : f32 to vector<256x64xf32>
      %c0_10 = arith.constant 0 : index
      %c0_11 = arith.constant 0 : index
      %13 = vector.load %arg6[%c0_10, %c0_11] : memref<256x64xf32, #tpu.memory_space<vmem>>, vector<256x64xf32>
      tpu.vector_store %arg6[%c0_10, %c0_11], %12 {strides = array<i32>} : memref<256x64xf32, #tpu.memory_space<vmem>>, vector<256x64xf32>,
    } else {
    }
    %c0 = arith.constant 0 : index
    %c0_1 = arith.constant 0 : index
    %3 = vector.load %arg6[%c0, %c0_1] : memref<256x64xf32, #tpu.memory_space<vmem>>, vector<256x64xf32>
    %c0_2 = arith.constant 0 : index
    %c0_3 = arith.constant 0 : index
    %4 = vector.load %arg4[%c0_2, %c0_3] : memref<256x256xbf16, #tpu.memory_space<vmem>>, vector<256x256xbf16>
    %c0_4 = arith.constant 0 : index
    %c0_5 = arith.constant 0 : index
    %5 = vector.load %arg2[%c0_4, %c0_5] : memref<256x64xbf16, #tpu.memory_space<vmem>>, vector<256x64xbf16>
    %cst = arith.constant dense<0.000000e+00> : vector<256x64xf32>
    %6 = tpu.matmul %4, %5, %cst {dimension_numbers = #tpu.dot_dimension_numbers<[1], [0], [0], [1], [0, 0, 1, 1], [], []>} : vector<256x256xbf16>, vector<256x64xbf16>, vector<256x64xf32> -> vector<256x64xf32>
    %7 = arith.addf %3, %6 : vector<256x64xf32>
    %c0_6 = arith.constant 0 : index
    %c0_7 = arith.constant 0 : index
    %8 = vector.load %arg6[%c0_6, %c0_7] : memref<256x64xf32, #tpu.memory_space<vmem>>, vector<256x64xf32>
    tpu.vector_store %arg6[%c0_6, %c0_7], %7 {strides = array<i32>} : memref<256x64xf32, #tpu.memory_space<vmem>>, vector<256x64xf32>,
    %c1_i32 = arith.constant 1 : i32
    %9 = arith.cmpi eq, %arg1, %c1_i32 : i32
    %10 = arith.extui %9 : i1 to i32
    %c0_i32_8 = arith.constant 0 : i32
    %11 = arith.cmpi ne, %10, %c0_i32_8 : i32
    scf.if %11 {
      %c0_9 = arith.constant 0 : index
      %c0_10 = arith.constant 0 : index
      %12 = vector.load %arg6[%c0_9, %c0_10] : memref<256x64xf32, #tpu.memory_space<vmem>>, vector<256x64xf32>
      %c0_11 = arith.constant 0 : index
      %c0_12 = arith.constant 0 : index
      %13 = vector.load %arg3[%c0_11, %c0_12] : memref<64x128xf32, #tpu.memory_space<vmem>>, vector<64x128xf32>
      %cst_13 = arith.constant dense<0.000000e+00> : vector<256x128xf32>
      %14 = tpu.matmul %12, %13, %cst_13 {dimension_numbers = #tpu.dot_dimension_numbers<[1], [0], [0], [1], [0, 0, 1, 1], [], []>} : vector<256x64xf32>, vector<64x128xf32>, vector<256x128xf32> -> vector<256x128xf32>
      %15 = math.tanh %14 : vector<256x128xf32>
      %c0_14 = arith.constant 0 : index
      %c0_15 = arith.constant 0 : index
      %16 = vector.load %arg5[%c0_14, %c0_15] : memref<256x128xf32, #tpu.memory_space<vmem>>, vector<256x128xf32>
      tpu.vector_store %arg5[%c0_14, %c0_15], %15 {strides = array<i32>} : memref<256x128xf32, #tpu.memory_space<vmem>>, vector<256x128xf32>,
    } else {
    }
    return
  }
  func.func @transform_0(%arg0: i32, %arg1: i32) -> (i32, i32) {
    %c0_i32 = arith.constant 0 : i32
    %c0_i32_0 = arith.constant 0 : i32
    return %arg1, %c0_i32 : i32, i32
  }
  func.func @transform_1(%arg0: i32, %arg1: i32) -> (i32, i32) {
    %c0_i32 = arith.constant 0 : i32
    %c0_i32_0 = arith.constant 0 : i32
    %c0_i32_1 = arith.constant 0 : i32
    return %c0_i32, %c0_i32_0 : i32, i32
  }
  func.func @transform_2(%arg0: i32, %arg1: i32) -> (i32, i32) {
    %c0_i32 = arith.constant 0 : i32
    return %arg0, %arg1 : i32, i32
  }
  func.func @transform_3(%arg0: i32, %arg1: i32) -> (i32, i32) {
    %c0_i32 = arith.constant 0 : i32
    %c0_i32_0 = arith.constant 0 : i32
    return %arg0, %c0_i32 : i32, i32
  }
}

</mosaic_0001>

<llo_original>
// kernel: tpu_custom_call.1
$region0: #{tpu_custom_call.1}
  #allocation0 [shape = 'u32[]', space=smem, size = 0x4, offset = 0x4, fixed_abs, tag = 'smem constant byte address 0x4 - core index']
  #allocation1 [shape = 'u32[144,128]{1,0:T(1,128)}', space=vmem, size = 0x12000, scoped, tag = 'internal scratch']
  #allocation2 [shape = 'f32[256,64]{1,0:T(8,128)}', space=vmem, size = 0x20000, scoped, tag = 'scratch operand']
  %s0 = inlined_call_operand.vmem [shape: bf16[512,64], index: 0, kind: input, shape index: {}]
  %s1 = inlined_call_operand.vmem [shape: f32[64,128], index: 1, kind: input, shape index: {}]
  %s2 = inlined_call_operand.hbm [shape: bf16[512,512], index: 2, kind: input, shape index: {}]
  %s3 = inlined_call_operand.hbm [shape: f32[512,128], index: 3, kind: output, shape index: {}]
  %s4 = sld [smem:[#allocation0]]
  $region57: #{tpu_custom_call.1} parent=0
    _
  %s6 = ssub.s32 1, %s4
  %s7 = scalar_select 0, %s6, %s4
  $region1: #{tpu_custom_call.1} parent=0
    #allocation3 [shape = 'u8[262144]{0}', space=vmem, size = 0x40000, scoped, tag = 'input window, operand 2']
    #allocation4 [shape = 's32[2]{0}', space=sflag, size = 0x8, scoped, tag = 'scoped memory for tpu_custom_call.1']
    #allocation5 [shape = 's32[2]{0}', space=sflag, size = 0x8, scoped, tag = 'scoped memory for tpu_custom_call.1']
    #allocation6 [shape = 'u8[262144]{0}', space=vmem, size = 0x40000, scoped, tag = 'output window, operand 0']
    %8 = vsyncpa [#allocation4], 0
    %s9 = scalar_lea.sflag [#allocation4], 1
    %10 = vsyncpa %s9, 0
    %11 = vsyncpa [#allocation5], 0
    %s12 = scalar_lea.sflag [#allocation5], 1
    %13 = vsyncpa %s12, 0
    loop: start=0, step=1, limit=6
    $region2: #{tpu_custom_call.1} parent=1 // loop_pre_header
      _
    $region3: #{tpu_custom_call.1} parent=1 // loop_header
      %s15 = sphi 0, %s19
      %p16 = scmp.ge.s32.totalorder %s15, 6
      %s22 = sphi 0, %s34
      %s23 = sphi 0, %s30
      %s24 = sphi 0, %s22
      %s25 = sphi 0, %s23
      %s26 = sphi 0, %s24
      %s27 = sphi 0, %s25
      %s37 = sphi 0, %s39
      %s40 = sphi 0, %s37
      %s41 = sphi 0, %s40
      %s57 = sphi 0, %s41
      %s61 = sphi 0, %s61
      %s63 = sphi 0, %s61
      %s64 = sphi 0, %s63
      %s78 = sphi 0, %s64
      %s86 = sphi 0, %s88
      %s89 = sphi 0, %s86
      %s90 = sphi 0, %s89
      %s106 = sphi 0, %s90
      %s112 = sphi 0, %s114
      %s115 = sphi 0, %s112
      %s116 = sphi 0, %s115
      %s132 = sphi 0, %s116
    $region4: #{tpu_custom_call.1} parent=1 // loop_header_branch
      %18 = sbr.rel (%p16) target = $region8
    $region5: #{tpu_custom_call.1} parent=1 // loop_body
      %s20 = ssub.s32 %s15, 1
      %s21 = ssub.s32 %s15, 2
      %s28 = sadd.s32 1, %s23
      %p29 = scmp.ge.s32.totalorder %s28, 2
      %s30 = scalar_select %p29, 0, %s28
      %s31 = sadd.s32 1, %s22
      %s32 = scalar_select %p29, %s31, %s22
      %p33 = scmp.ge.s32.totalorder %s32, 2
      %s34 = scalar_select %p33, 0, %s32
      %s35 = ssub.s32 %s23, %s30
      %p36 = scmp.eq.s32.totalorder %s35, 0
      %s38 = sadd.s32 %s37, 1
      %s39 = scalar_select %p36, %s37, %s38
      %p42 = pneg %p36
      %p43 = scmp.eq.s32.totalorder %s15, 3
      %p44 = por %p42, %p43
      %p45 = scmp.ne.s32.totalorder %s37, %s40
      %p46 = scmp.eq.s32.totalorder %s15, 0
      %p47 = por %p45, %p46
      %p48 = scmp.ne.s32.totalorder %s37, %s40
      %p49 = scmp.eq.s32.totalorder %s20, 3
      %p50 = por %p48, %p49
      %p51 = scmp.ne.s32.totalorder %s40, %s41
      %p52 = scmp.eq.s32.totalorder %s20, 0
      %p53 = por %p51, %p52
      %p54 = scmp.ne.s32.totalorder %s40, %s41
      %p55 = scmp.eq.s32.totalorder %s21, 3
      %p56 = por %p54, %p55
      %p58 = scmp.ne.s32.totalorder %s41, %s57
      %p59 = scmp.eq.s32.totalorder %s21, 0
      %p60 = por %p58, %p59
      %s62 = sadd.s32 %s61, 1
      %p65 = scmp.eq.s32.totalorder %s15, 3
      %p66 = scmp.ne.s32.totalorder %s61, %s63
      %p67 = scmp.eq.s32.totalorder %s15, 0
      %p68 = por %p66, %p67
      %p69 = scmp.ne.s32.totalorder %s61, %s63
      %p70 = scmp.eq.s32.totalorder %s20, 3
      %p71 = por %p69, %p70
      %p72 = scmp.ne.s32.totalorder %s63, %s64
      %p73 = scmp.eq.s32.totalorder %s20, 0
      %p74 = por %p72, %p73
      %p75 = scmp.ne.s32.totalorder %s63, %s64
      %p76 = scmp.eq.s32.totalorder %s21, 3
      %p77 = por %p75, %p76
      %p79 = scmp.ne.s32.totalorder %s64, %s78
      %p80 = scmp.eq.s32.totalorder %s21, 0
      %p81 = por %p79, %p80
      %s82 = ssub.s32 %s22, %s34
      %s83 = ssub.s32 %s23, %s30
      %s84 = sor.u32 %s82, %s83
      %p85 = scmp.eq.s32.totalorder %s84, 0
      %s87 = sadd.s32 %s86, 1
      %s88 = scalar_select %p85, %s86, %s87
      %p91 = pneg %p85
      %p92 = scmp.eq.s32.totalorder %s15, 3
      %p93 = por %p91, %p92
      %p94 = scmp.ne.s32.totalorder %s86, %s89
      %p95 = scmp.eq.s32.totalorder %s15, 0
      %p96 = por %p94, %p95
      %p97 = scmp.ne.s32.totalorder %s86, %s89
      %p98 = scmp.eq.s32.totalorder %s20, 3
      %p99 = por %p97, %p98
      %p100 = scmp.ne.s32.totalorder %s89, %s90
      %p101 = scmp.eq.s32.totalorder %s20, 0
      %p102 = por %p100, %p101
      %p103 = scmp.ne.s32.totalorder %s89, %s90
      %p104 = scmp.eq.s32.totalorder %s21, 3
      %p105 = por %p103, %p104
      %p107 = scmp.ne.s32.totalorder %s90, %s106
      %p108 = scmp.eq.s32.totalorder %s21, 0
      %p109 = por %p107, %p108
      %s110 = ssub.s32 %s22, %s34
      %p111 = scmp.eq.s32.totalorder %s110, 0
      %s113 = sadd.s32 %s112, 1
      %s114 = scalar_select %p111, %s112, %s113
      %p117 = pneg %p111
      %p118 = scmp.eq.s32.totalorder %s15, 3
      %p119 = por %p117, %p118
      %p120 = scmp.ne.s32.totalorder %s112, %s115
      %p121 = scmp.eq.s32.totalorder %s15, 0
      %p122 = por %p120, %p121
      %p123 = scmp.ne.s32.totalorder %s112, %s115
      %p124 = scmp.eq.s32.totalorder %s20, 3
      %p125 = por %p123, %p124
      %p126 = scmp.ne.s32.totalorder %s115, %s116
      %p127 = scmp.eq.s32.totalorder %s20, 0
      %p128 = por %p126, %p127
      %p129 = scmp.ne.s32.totalorder %s115, %s116
      %p130 = scmp.eq.s32.totalorder %s21, 3
      %p131 = por %p129, %p130
      %p133 = scmp.ne.s32.totalorder %s116, %s132
      %p134 = scmp.eq.s32.totalorder %s21, 0
      %p135 = por %p133, %p134
      %p136 = scmp.le.s32.totalorder 1, %s15
      %p137 = scmp.lt.s32.totalorder %s15, 5
      %p138 = pnand %p136, %p137
      %p139 = pneg %p138
      // Predicated region
      $region9: #{tpu_custom_call.1} parent=5 // pred_check
        _
      $region10: #{tpu_custom_call.1} parent=5 // pred_check_branch
        %141 = sbr.rel (%p138) target = $region12
      $region11: #{tpu_custom_call.1} parent=5 // pred_region
        %s142 = ssub.s32 %s15, 1
        // Predicated region
        $region13: #{tpu_custom_call.1} parent=11 // pred_check
          %p143 = pneg %p74
        $region14: #{tpu_custom_call.1} parent=11 // pred_check_branch
          %145 = sbr.rel (%p143) target = $region16
        $region15: #{tpu_custom_call.1} parent=11 // pred_region
          _
        $region16: #{tpu_custom_call.1} parent=11 // pred_fallthru
          _
      $region12: #{tpu_custom_call.1} parent=5 // pred_fallthru
        _
      %p146 = scmp.lt.s32.totalorder %s15, 4
      // Predicated region
      $region17: #{tpu_custom_call.1} parent=5 // pred_check
        %p147 = pneg %p146
      $region18: #{tpu_custom_call.1} parent=5 // pred_check_branch
        %149 = sbr.rel (%p147) target = $region20
      $region19: #{tpu_custom_call.1} parent=5 // pred_region
        // Predicated region
        $region21: #{tpu_custom_call.1} parent=19 // pred_check
          %p150 = pneg %p47
        $region22: #{tpu_custom_call.1} parent=19 // pred_check_branch
          %152 = sbr.rel (%p150) target = $region24
        $region23: #{tpu_custom_call.1} parent=19 // pred_region
          %s153 = smul.u32 32, %s23
          %p154 = scmp.lt.s32.totalorder %s153, 63
          %s155 = scalar_select %p154, %s153, 63
          %s156 = smul.addr %s155, 4
          %s157 = scalar_lea.vmem %s0, %s156
          %s158 = smul.u32 32, %s23
        $region24: #{tpu_custom_call.1} parent=19 // pred_fallthru
          _
        // Predicated region
        $region25: #{tpu_custom_call.1} parent=19 // pred_check
          %p159 = pneg %p96
        $region26: #{tpu_custom_call.1} parent=19 // pred_check_branch
          %161 = sbr.rel (%p159) target = $region28
        $region27: #{tpu_custom_call.1} parent=19 // pred_region
          %s162 = sand.u32 %s86, 1
          %s163 = scalar_lea.sflag [#allocation4], %s162
          %s164 = sand.u32 %s86, 1
          %s165 = smul.addr %s164, 256
          %s166 = scalar_lea.vmem [#allocation3], %s165
          %s167 = smul.u32 32, %s22
          %s168 = smul.u32 2, %s23
          %s170 = ssub.s32 4096, 4096
          %171 = vsyncadd %s163, %s170
          %s172 = smul.addr %s167, 4
          %s173 = sadd.s32 %s168, %s172
          %s174 = smul.addr %s173, 64
          %s175 = scalar_lea.hbm %s2, %s174
          %s176 = sshll.u32 %s166, 4
          %s177 = int_to_ptr.vmem [resolvable:$true] %s176
          %182 = dma.hbm_to_vmem [thread:$0]  %s175, 4096, %s177, %s163, 256, 128, 8
        $region28: #{tpu_custom_call.1} parent=19 // pred_fallthru
          _
      $region20: #{tpu_custom_call.1} parent=5 // pred_fallthru
        _
      %p183 = scmp.le.s32.totalorder 1, %s15
      %p184 = scmp.lt.s32.totalorder %s15, 5
      %p185 = pnand %p183, %p184
      %p186 = pneg %p185
      // Predicated region
      $region29: #{tpu_custom_call.1} parent=5 // pred_check
        _
      $region30: #{tpu_custom_call.1} parent=5 // pred_check_branch
        %188 = sbr.rel (%p185) target = $region32
      $region31: #{tpu_custom_call.1} parent=5 // pred_region
        %s189 = ssub.s32 %s15, 1
        %s190 = sand.u32 %s89, 1
        %s191 = scalar_lea.sflag [#allocation4], %s190
        %s192 = sand.u32 %s89, 1
        %s193 = smul.addr %s192, 256
        %s194 = scalar_lea.vmem [#allocation3], %s193
        // Predicated region
        $region33: #{tpu_custom_call.1} parent=31 // pred_check
          %p195 = pneg %p102
        $region34: #{tpu_custom_call.1} parent=31 // pred_check_branch
          %197 = sbr.rel (%p195) target = $region36
        $region35: #{tpu_custom_call.1} parent=31 // pred_region
          %198 = dma.done %s191, 4096
        $region36: #{tpu_custom_call.1} parent=31 // pred_fallthru
          _
        %s199 = smul.u32 32, %s25
        %p200 = scmp.lt.s32.totalorder %s199, 63
        %s201 = scalar_select %p200, %s199, 63
        %s202 = smul.addr %s201, 4
        %s203 = scalar_lea.vmem %s0, %s202
        %p204 = pneg %p53
        %p205 = pneg %p50
        %p206 = pneg %p74
        %p207 = pneg %p71
        %s208 = sand.u32 %s89, 1
        %s209 = scalar_lea.sflag [#allocation4], %s208
        %s210 = sand.u32 %s89, 1
        %s211 = smul.addr %s210, 256
        %s212 = scalar_lea.vmem [#allocation3], %s211
        %p213 = pneg %p102
        %p214 = pneg %p99
        %p215 = pneg %p128
        %p216 = pneg %p125
        %s217 = sand.u32 %s115, 1
        %s218 = scalar_lea.sflag [#allocation5], %s217
        %s219 = sand.u32 %s115, 1
        %s220 = smul.addr %s219, 256
        %s221 = scalar_lea.vmem [#allocation6], %s220
        %s222 = smul.u32 32, %s25
        %p223 = scmp.lt.s32.totalorder %s222, 63
        %s224 = scalar_select %p223, %s222, 63
        %s225 = smul.addr %s224, 4
        %s226 = scalar_lea.vmem %s0, %s225
        %s227 = smul.u32 32, %s25
        %s228 = smul.u32 32, %s24
        %s229 = smul.u32 2, %s25
        %s230 = smul.u32 32, %s24
        %p232 = scmp.eq.s32.totalorder %s25, 0
        // Predicated region
        $region37: #{tpu_custom_call.1} parent=31 // pred_check
          %p233 = pneg %p232
        $region38: #{tpu_custom_call.1} parent=31 // pred_check_branch
          %235 = sbr.rel (%p233) target = $region40
        $region39: #{tpu_custom_call.1} parent=31 // pred_region
          %vm236 = vcmask 523264
          %237 = vst.msk [vmem:[#allocation2] sm:$0xff] %vm236, 0.0
          %238 = vst.msk [vmem:[#allocation2 + $0x8] sm:$0xff] %vm236, 0.0
          %239 = vst.msk [vmem:[#allocation2 + $0x10] sm:$0xff] %vm236, 0.0
          %240 = vst.msk [vmem:[#allocation2 + $0x18] sm:$0xff] %vm236, 0.0
          %241 = vst.msk [vmem:[#allocation2 + $0x20] sm:$0xff] %vm236, 0.0
          %242 = vst.msk [vmem:[#allocation2 + $0x28] sm:$0xff] %vm236, 0.0
          %243 = vst.msk [vmem:[#allocation2 + $0x30] sm:$0xff] %vm236, 0.0
          %244 = vst.msk [vmem:[#allocation2 + $0x38] sm:$0xff] %vm236, 0.0
          %245 = vst.msk [vmem:[#allocation2 + $0x40] sm:$0xff] %vm236, 0.0
          %246 = vst.msk [vmem:[#allocation2 + $0x48] sm:$0xff] %vm236, 0.0
          %247 = vst.msk [vmem:[#allocation2 + $0x50] sm:$0xff] %vm236, 0.0
          %248 = vst.msk [vmem:[#allocation2 + $0x58] sm:$0xff] %vm236, 0.0
          %249 = vst.msk [vmem:[#allocation2 + $0x60] sm:$0xff] %vm236, 0.0
          %250 = vst.msk [vmem:[#allocation2 + $0x68] sm:$0xff] %vm236, 0.0
          %251 = vst.msk [vmem:[#allocation2 + $0x70] sm:$0xff] %vm236, 0.0
          %252 = vst.msk [vmem:[#allocation2 + $0x78] sm:$0xff] %vm236, 0.0
          %253 = vst.msk [vmem:[#allocation2 + $0x80] sm:$0xff] %vm236, 0.0
          %254 = vst.msk [vmem:[#allocation2 + $0x88] sm:$0xff] %vm236, 0.0
          %255 = vst.msk [vmem:[#allocation2 + $0x90] sm:$0xff] %vm236, 0.0
          %256 = vst.msk [vmem:[#allocation2 + $0x98] sm:$0xff] %vm236, 0.0
          %257 = vst.msk [vmem:[#allocation2 + $0xa0] sm:$0xff] %vm236, 0.0
          %258 = vst.msk [vmem:[#allocation2 + $0xa8] sm:$0xff] %vm236, 0.0
          %259 = vst.msk [vmem:[#allocation2 + $0xb0] sm:$0xff] %vm236, 0.0
          %260 = vst.msk [vmem:[#allocation2 + $0xb8] sm:$0xff] %vm236, 0.0
          %261 = vst.msk [vmem:[#allocation2 + $0xc0] sm:$0xff] %vm236, 0.0
          %262 = vst.msk [vmem:[#allocation2 + $0xc8] sm:$0xff] %vm236, 0.0
          %263 = vst.msk [vmem:[#allocation2 + $0xd0] sm:$0xff] %vm236, 0.0
          %264 = vst.msk [vmem:[#allocation2 + $0xd8] sm:$0xff] %vm236, 0.0
          %265 = vst.msk [vmem:[#allocation2 + $0xe0] sm:$0xff] %vm236, 0.0
          %266 = vst.msk [vmem:[#allocation2 + $0xe8] sm:$0xff] %vm236, 0.0
          %267 = vst.msk [vmem:[#allocation2 + $0xf0] sm:$0xff] %vm236, 0.0
          %268 = vst.msk [vmem:[#allocation2 + $0xf8] sm:$0xff] %vm236, 0.0
        $region40: #{tpu_custom_call.1} parent=31 // pred_fallthru
          _
        %v269 = vld [vmem:[#allocation2] sm:$0xff]
        %v270 = vld [vmem:[#allocation2 + $0x8] sm:$0xff]
        %v271 = vld [vmem:[#allocation2 + $0x10] sm:$0xff]
        %v272 = vld [vmem:[#allocation2 + $0x18] sm:$0xff]
        %v273 = vld [vmem:[#allocation2 + $0x20] sm:$0xff]
        %v274 = vld [vmem:[#allocation2 + $0x28] sm:$0xff]
        %v275 = vld [vmem:[#allocation2 + $0x30] sm:$0xff]
        %v276 = vld [vmem:[#allocation2 + $0x38] sm:$0xff]
        %v277 = vld [vmem:[#allocation2 + $0x40] sm:$0xff]
        %v278 = vld [vmem:[#allocation2 + $0x48] sm:$0xff]
        %v279 = vld [vmem:[#allocation2 + $0x50] sm:$0xff]
        %v280 = vld [vmem:[#allocation2 + $0x58] sm:$0xff]
        %v281 = vld [vmem:[#allocation2 + $0x60] sm:$0xff]
        %v282 = vld [vmem:[#allocation2 + $0x68] sm:$0xff]
        %v283 = vld [vmem:[#allocation2 + $0x70] sm:$0xff]
        %v284 = vld [vmem:[#allocation2 + $0x78] sm:$0xff]
        %v285 = vld [vmem:[#allocation2 + $0x80] sm:$0xff]
        %v286 = vld [vmem:[#allocation2 + $0x88] sm:$0xff]
        %v287 = vld [vmem:[#allocation2 + $0x90] sm:$0xff]
        %v288 = vld [vmem:[#allocation2 + $0x98] sm:$0xff]
        %v289 = vld [vmem:[#allocation2 + $0xa0] sm:$0xff]
        %v290 = vld [vmem:[#allocation2 + $0xa8] sm:$0xff]
        %v291 = vld [vmem:[#allocation2 + $0xb0] sm:$0xff]
        %v292 = vld [vmem:[#allocation2 + $0xb8] sm:$0xff]
        %v293 = vld [vmem:[#allocation2 + $0xc0] sm:$0xff]
        %v294 = vld [vmem:[#allocation2 + $0xc8] sm:$0xff]
        %v295 = vld [vmem:[#allocation2 + $0xd0] sm:$0xff]
        %v296 = vld [vmem:[#allocation2 + $0xd8] sm:$0xff]
        %v297 = vld [vmem:[#allocation2 + $0xe0] sm:$0xff]
        %v298 = vld [vmem:[#allocation2 + $0xe8] sm:$0xff]
        %v299 = vld [vmem:[#allocation2 + $0xf0] sm:$0xff]
        %v300 = vld [vmem:[#allocation2 + $0xf8] sm:$0xff]
        %v301 = vld [vmem:[%s194] sm:$0xff]
        %v302 = vld [vmem:[%s194 + $0x8] sm:$0xff]
        %v303 = vld [vmem:[%s194 + $0x10] sm:$0xff]
        %v304 = vld [vmem:[%s194 + $0x18] sm:$0xff]
        %v305 = vld [vmem:[%s194 + $0x20] sm:$0xff]
        %v306 = vld [vmem:[%s194 + $0x28] sm:$0xff]
        %v307 = vld [vmem:[%s194 + $0x30] sm:$0xff]
        %v308 = vld [vmem:[%s194 + $0x38] sm:$0xff]
        %v309 = vld [vmem:[%s194 + $0x40] sm:$0xff]
        %v310 = vld [vmem:[%s194 + $0x48] sm:$0xff]
        %v311 = vld [vmem:[%s194 + $0x50] sm:$0xff]
        %v312 = vld [vmem:[%s194 + $0x58] sm:$0xff]
        %v313 = vld [vmem:[%s194 + $0x60] sm:$0xff]
        %v314 = vld [vmem:[%s194 + $0x68] sm:$0xff]
        %v315 = vld [vmem:[%s194 + $0x70] sm:$0xff]
        %v316 = vld [vmem:[%s194 + $0x78] sm:$0xff]
        %v317 = vld [vmem:[%s194 + $0x80] sm:$0xff]
        %v318 = vld [vmem:[%s194 + $0x88] sm:$0xff]
        %v319 = vld [vmem:[%s194 + $0x90] sm:$0xff]
        %v320 = vld [vmem:[%s194 + $0x98] sm:$0xff]
        %v321 = vld [vmem:[%s194 + $0xa0] sm:$0xff]
        %v322 = vld [vmem:[%s194 + $0xa8] sm:$0xff]
        %v323 = vld [vmem:[%s194 + $0xb0] sm:$0xff]
        %v324 = vld [vmem:[%s194 + $0xb8] sm:$0xff]
        %v325 = vld [vmem:[%s194 + $0xc0] sm:$0xff]
        %v326 = vld [vmem:[%s194 + $0xc8] sm:$0xff]
        %v327 = vld [vmem:[%s194 + $0xd0] sm:$0xff]
        %v328 = vld [vmem:[%s194 + $0xd8] sm:$0xff]
        %v329 = vld [vmem:[%s194 + $0xe0] sm:$0xff]
        %v330 = vld [vmem:[%s194 + $0xe8] sm:$0xff]
        %v331 = vld [vmem:[%s194 + $0xf0] sm:$0xff]
        %v332 = vld [vmem:[%s194 + $0xf8] sm:$0xff]
        %v333 = vld [vmem:[%s226] sm:$0xf]
        %v334 = vld [vmem:[%s226 + $0x4] sm:$0xf]
        %v335 = vld [vmem:[%s226 + $0x8] sm:$0xf]
        %v336 = vld [vmem:[%s226 + $0xc] sm:$0xf]
        %v337 = vld [vmem:[%s226 + $0x10] sm:$0xf]
        %v338 = vld [vmem:[%s226 + $0x14] sm:$0xf]
        %v339 = vld [vmem:[%s226 + $0x18] sm:$0xf]
        %v340 = vld [vmem:[%s226 + $0x1c] sm:$0xf]
        %v341 = vld [vmem:[%s226 + $0x20] sm:$0xf]
        %v342 = vld [vmem:[%s226 + $0x24] sm:$0xf]
        %v343 = vld [vmem:[%s226 + $0x28] sm:$0xf]
        %v344 = vld [vmem:[%s226 + $0x2c] sm:$0xf]
        %v345 = vld [vmem:[%s226 + $0x30] sm:$0xf]
        %v346 = vld [vmem:[%s226 + $0x34] sm:$0xf]
        %v347 = vld [vmem:[%s226 + $0x38] sm:$0xf]
        %v348 = vld [vmem:[%s226 + $0x3c] sm:$0xf]
        %v349 = vld [vmem:[%s226 + $0x40] sm:$0xf]
        %v350 = vld [vmem:[%s226 + $0x44] sm:$0xf]
        %v351 = vld [vmem:[%s226 + $0x48] sm:$0xf]
        %v352 = vld [vmem:[%s226 + $0x4c] sm:$0xf]
        %v353 = vld [vmem:[%s226 + $0x50] sm:$0xf]
        %v354 = vld [vmem:[%s226 + $0x54] sm:$0xf]
        %v355 = vld [vmem:[%s226 + $0x58] sm:$0xf]
        %v356 = vld [vmem:[%s226 + $0x5c] sm:$0xf]
        %v357 = vld [vmem:[%s226 + $0x60] sm:$0xf]
        %v358 = vld [vmem:[%s226 + $0x64] sm:$0xf]
        %v359 = vld [vmem:[%s226 + $0x68] sm:$0xf]
        %v360 = vld [vmem:[%s226 + $0x6c] sm:$0xf]
        %v361 = vld [vmem:[%s226 + $0x70] sm:$0xf]
        %v362 = vld [vmem:[%s226 + $0x74] sm:$0xf]
        %v363 = vld [vmem:[%s226 + $0x78] sm:$0xf]
        %v364 = vld [vmem:[%s226 + $0x7c] sm:$0xf]
        %v397 = vunpack.c.l.b16 %v301
        %v398 = vunpack.c.h.b16 %v301
        %v399 = vunpack.c.l.b16 %v302
        %v400 = vunpack.c.h.b16 %v302
        %v401 = vunpack.c.l.b16 %v303
        %v402 = vunpack.c.h.b16 %v303
        %v403 = vunpack.c.l.b16 %v304
        %v404 = vunpack.c.h.b16 %v304
        %v405 = vunpack.c.l.b16 %v305
        %v406 = vunpack.c.h.b16 %v305
        %v407 = vunpack.c.l.b16 %v306
        %v408 = vunpack.c.h.b16 %v306
        %v409 = vunpack.c.l.b16 %v307
        %v410 = vunpack.c.h.b16 %v307
        %v411 = vunpack.c.l.b16 %v308
        %v412 = vunpack.c.h.b16 %v308
        %v413 = vunpack.c.l.b16 %v309
        %v414 = vunpack.c.h.b16 %v309
        %v415 = vunpack.c.l.b16 %v310
        %v416 = vunpack.c.h.b16 %v310
        %v417 = vunpack.c.l.b16 %v311
        %v418 = vunpack.c.h.b16 %v311
        %v419 = vunpack.c.l.b16 %v312
        %v420 = vunpack.c.h.b16 %v312
        %v421 = vunpack.c.l.b16 %v313
        %v422 = vunpack.c.h.b16 %v313
        %v423 = vunpack.c.l.b16 %v314
        %v424 = vunpack.c.h.b16 %v314
        %v425 = vunpack.c.l.b16 %v315
        %v426 = vunpack.c.h.b16 %v315
        %v427 = vunpack.c.l.b16 %v316
        %v428 = vunpack.c.h.b16 %v316
        %v429 = vunpack.c.l.b16 %v317
        %v430 = vunpack.c.h.b16 %v317
        %v431 = vunpack.c.l.b16 %v318
        %v432 = vunpack.c.h.b16 %v318
        %v433 = vunpack.c.l.b16 %v319
        %v434 = vunpack.c.h.b16 %v319
        %v435 = vunpack.c.l.b16 %v320
        %v436 = vunpack.c.h.b16 %v320
        %v437 = vunpack.c.l.b16 %v321
        %v438 = vunpack.c.h.b16 %v321
        %v439 = vunpack.c.l.b16 %v322
        %v440 = vunpack.c.h.b16 %v322
        %v441 = vunpack.c.l.b16 %v323
        %v442 = vunpack.c.h.b16 %v323
        %v443 = vunpack.c.l.b16 %v324
        %v444 = vunpack.c.h.b16 %v324
        %v445 = vunpack.c.l.b16 %v325
        %v446 = vunpack.c.h.b16 %v325
        %v447 = vunpack.c.l.b16 %v326
        %v448 = vunpack.c.h.b16 %v326
        %v449 = vunpack.c.l.b16 %v327
        %v450 = vunpack.c.h.b16 %v327
        %v451 = vunpack.c.l.b16 %v328
        %v452 = vunpack.c.h.b16 %v328
        %v453 = vunpack.c.l.b16 %v329
        %v454 = vunpack.c.h.b16 %v329
        %v455 = vunpack.c.l.b16 %v330
        %v456 = vunpack.c.h.b16 %v330
        %v457 = vunpack.c.l.b16 %v331
        %v458 = vunpack.c.h.b16 %v331
        %v459 = vunpack.c.l.b16 %v332
        %v460 = vunpack.c.h.b16 %v332
        %v461 = vpack.c.b16 %v399, %v397
        %v462 = vpack.c.b16 %v400, %v398
        %v463 = vpack.c.b16 %v403, %v401
        %v464 = vpack.c.b16 %v404, %v402
        %v465 = vpack.c.b16 %v407, %v405
        %v466 = vpack.c.b16 %v408, %v406
        %v467 = vpack.c.b16 %v411, %v409
        %v468 = vpack.c.b16 %v412, %v410
        %v469 = vpack.c.b16 %v415, %v413
        %v470 = vpack.c.b16 %v416, %v414
        %v471 = vpack.c.b16 %v419, %v417
        %v472 = vpack.c.b16 %v420, %v418
        %v473 = vpack.c.b16 %v423, %v421
        %v474 = vpack.c.b16 %v424, %v422
        %v475 = vpack.c.b16 %v427, %v425
        %v476 = vpack.c.b16 %v428, %v426
        %v477 = vpack.c.b16 %v431, %v429
        %v478 = vpack.c.b16 %v432, %v430
        %v479 = vpack.c.b16 %v435, %v433
        %v480 = vpack.c.b16 %v436, %v434
        %v481 = vpack.c.b16 %v439, %v437
        %v482 = vpack.c.b16 %v440, %v438
        %v483 = vpack.c.b16 %v443, %v441
        %v484 = vpack.c.b16 %v444, %v442
        %v485 = vpack.c.b16 %v447, %v445
        %v486 = vpack.c.b16 %v448, %v446
        %v487 = vpack.c.b16 %v451, %v449
        %v488 = vpack.c.b16 %v452, %v450
        %v489 = vpack.c.b16 %v455, %v453
        %v490 = vpack.c.b16 %v456, %v454
        %v491 = vpack.c.b16 %v459, %v457
        %v492 = vpack.c.b16 %v460, %v458
        %v557 = vunpack.c.l.b16 %v333
        %v558 = vunpack.c.l.b16 %v334
        %v559 = vunpack.c.l.b16 %v335
        %v560 = vunpack.c.l.b16 %v336
        %v561 = vunpack.c.l.b16 %v337
        %v562 = vunpack.c.l.b16 %v338
        %v563 = vunpack.c.l.b16 %v339
        %v564 = vunpack.c.l.b16 %v340
        %v565 = vunpack.c.l.b16 %v341
        %v566 = vunpack.c.l.b16 %v342
        %v567 = vunpack.c.l.b16 %v343
        %v568 = vunpack.c.l.b16 %v344
        %v569 = vunpack.c.l.b16 %v345
        %v570 = vunpack.c.l.b16 %v346
        %v571 = vunpack.c.l.b16 %v347
        %v572 = vunpack.c.l.b16 %v348
        %v573 = vunpack.c.l.b16 %v349
        %v574 = vunpack.c.l.b16 %v350
        %v575 = vunpack.c.l.b16 %v351
        %v576 = vunpack.c.l.b16 %v352
        %v577 = vunpack.c.l.b16 %v353
        %v578 = vunpack.c.l.b16 %v354
        %v579 = vunpack.c.l.b16 %v355
        %v580 = vunpack.c.l.b16 %v356
        %v581 = vunpack.c.l.b16 %v357
        %v582 = vunpack.c.l.b16 %v358
        %v583 = vunpack.c.l.b16 %v359
        %v584 = vunpack.c.l.b16 %v360
        %v585 = vunpack.c.l.b16 %v361
        %v586 = vunpack.c.l.b16 %v362
        %v587 = vunpack.c.l.b16 %v363
        %v588 = vunpack.c.l.b16 %v364
        %v589 = vpack.c.b16 %v558, %v557
        %v590 = vpack.c.b16 %v560, %v559
        %v591 = vpack.c.b16 %v562, %v561
        %v592 = vpack.c.b16 %v564, %v563
        %v593 = vpack.c.b16 %v566, %v565
        %v594 = vpack.c.b16 %v568, %v567
        %v595 = vpack.c.b16 %v570, %v569
        %v596 = vpack.c.b16 %v572, %v571
        %v597 = vpack.c.b16 %v574, %v573
        %v598 = vpack.c.b16 %v576, %v575
        %v599 = vpack.c.b16 %v578, %v577
        %v600 = vpack.c.b16 %v580, %v579
        %v601 = vpack.c.b16 %v582, %v581
        %v602 = vpack.c.b16 %v584, %v583
        %v603 = vpack.c.b16 %v586, %v585
        %v604 = vpack.c.b16 %v588, %v587
        %621 = vmatprep.subr.bf16.mxu0 0
        %622 = vmatpush1.bf16.msra.mxu0 %v596
        %623 = vmatprep.subr.bf16.mxu0 0
        %624 = vmatpush1.bf16.msra.mxu0 %v595
        %625 = vmatprep.subr.bf16.mxu0 0
        %626 = vmatpush1.bf16.msra.mxu0 %v594
        %627 = vmatprep.subr.bf16.mxu0 0
        %628 = vmatpush1.bf16.msra.mxu0 %v593
        %629 = vmatprep.subr.bf16.mxu0 0
        %630 = vmatpush1.bf16.msra.mxu0 %v592
        %631 = vmatprep.subr.bf16.mxu0 0
        %632 = vmatpush1.bf16.msra.mxu0 %v591
        %633 = vmatprep.subr.bf16.mxu0 0
        %634 = vmatpush1.bf16.msra.mxu0 %v590
        %635 = vmatprep.subr.bf16.mxu0 0
        %636 = vmatpush1.bf16.msra.mxu0 %v589
        %637 = vmatprep.subr.bf16.mxu0 0
        %638 = vmatpush2.bf16.msra.mxu0 %v604
        %639 = vmatprep.subr.bf16.mxu0 0
        %640 = vmatpush2.bf16.msra.mxu0 %v603
        %641 = vmatprep.subr.bf16.mxu0 0
        %642 = vmatpush2.bf16.msra.mxu0 %v602
        %643 = vmatprep.subr.bf16.mxu0 0
        %644 = vmatpush2.bf16.msra.mxu0 %v601
        %645 = vmatprep.subr.bf16.mxu0 0
        %646 = vmatpush2.bf16.msra.mxu0 %v600
        %647 = vmatprep.subr.bf16.mxu0 0
        %648 = vmatpush2.bf16.msra.mxu0 %v599
        %649 = vmatprep.subr.bf16.mxu0 0
        %650 = vmatpush2.bf16.msra.mxu0 %v598
        %651 = vmatprep.subr.bf16.mxu0 0
        %652 = vmatpush2.bf16.msra.mxu0 %v597
        %653 = vmatprep.mubr.bf16.mxu0 %v462
        %654 = vmatmul.mubr.bf16.gmra.mxu0 %v461
        %v655 = vpop.f32.mrf.mxu0
        %v656 = vadd.f32 0.0, %v655
        %v657 = vpop.f32.mrf.mxu0
        %v658 = vpop.f32.mrf.mxu0
        %v659 = vadd.f32 0.0, %v658
        %v660 = vpop.f32.mrf.mxu0
        %661 = vmatprep.mubr.bf16.mxu0 %v464
        %662 = vmatmul.mubr.bf16.gmra.mxu0 %v463
        %v663 = vpop.f32.mrf.mxu0
        %v664 = vadd.f32 0.0, %v663
        %v665 = vpop.f32.mrf.mxu0
        %v666 = vpop.f32.mrf.mxu0
        %v667 = vadd.f32 0.0, %v666
        %v668 = vpop.f32.mrf.mxu0
        %669 = vmatprep.mubr.bf16.mxu0 %v466
        %670 = vmatmul.mubr.bf16.gmra.mxu0 %v465
        %v671 = vpop.f32.mrf.mxu0
        %v672 = vadd.f32 0.0, %v671
        %v673 = vpop.f32.mrf.mxu0
        %v674 = vpop.f32.mrf.mxu0
        %v675 = vadd.f32 0.0, %v674
        %v676 = vpop.f32.mrf.mxu0
        %677 = vmatprep.mubr.bf16.mxu0 %v468
        %678 = vmatmul.mubr.bf16.gmra.mxu0 %v467
        %v679 = vpop.f32.mrf.mxu0
        %v680 = vadd.f32 0.0, %v679
        %v681 = vpop.f32.mrf.mxu0
        %v682 = vpop.f32.mrf.mxu0
        %v683 = vadd.f32 0.0, %v682
        %v684 = vpop.f32.mrf.mxu0
        %685 = vmatprep.mubr.bf16.mxu0 %v470
        %686 = vmatmul.mubr.bf16.gmra.mxu0 %v469
        %v687 = vpop.f32.mrf.mxu0
        %v688 = vadd.f32 0.0, %v687
        %v689 = vpop.f32.mrf.mxu0
        %v690 = vpop.f32.mrf.mxu0
        %v691 = vadd.f32 0.0, %v690
        %v692 = vpop.f32.mrf.mxu0
        %693 = vmatprep.mubr.bf16.mxu0 %v472
        %694 = vmatmul.mubr.bf16.gmra.mxu0 %v471
        %v695 = vpop.f32.mrf.mxu0
        %v696 = vadd.f32 0.0, %v695
        %v697 = vpop.f32.mrf.mxu0
        %v698 = vpop.f32.mrf.mxu0
        %v699 = vadd.f32 0.0, %v698
        %v700 = vpop.f32.mrf.mxu0
        %701 = vmatprep.mubr.bf16.mxu0 %v474
        %702 = vmatmul.mubr.bf16.gmra.mxu0 %v473
        %v703 = vpop.f32.mrf.mxu0
        %v704 = vadd.f32 0.0, %v703
        %v705 = vpop.f32.mrf.mxu0
        %v706 = vpop.f32.mrf.mxu0
        %v707 = vadd.f32 0.0, %v706
        %v708 = vpop.f32.mrf.mxu0
        %709 = vmatprep.mubr.bf16.mxu0 %v476
        %710 = vmatmul.mubr.bf16.gmra.mxu0 %v475
        %v711 = vpop.f32.mrf.mxu0
        %v712 = vadd.f32 0.0, %v711
        %v713 = vpop.f32.mrf.mxu0
        %v714 = vpop.f32.mrf.mxu0
        %v715 = vadd.f32 0.0, %v714
        %v716 = vpop.f32.mrf.mxu0
        %717 = vmatprep.mubr.bf16.mxu0 %v478
        %718 = vmatmul.mubr.bf16.gmra.mxu0 %v477
        %v719 = vpop.f32.mrf.mxu0
        %v720 = vadd.f32 0.0, %v719
        %v721 = vpop.f32.mrf.mxu0
        %v722 = vpop.f32.mrf.mxu0
        %v723 = vadd.f32 0.0, %v722
        %v724 = vpop.f32.mrf.mxu0
        %725 = vmatprep.mubr.bf16.mxu0 %v480
        %726 = vmatmul.mubr.bf16.gmra.mxu0 %v479
        %v727 = vpop.f32.mrf.mxu0
        %v728 = vadd.f32 0.0, %v727
        %v729 = vpop.f32.mrf.mxu0
        %v730 = vpop.f32.mrf.mxu0
        %v731 = vadd.f32 0.0, %v730
        %v732 = vpop.f32.mrf.mxu0
        %733 = vmatprep.mubr.bf16.mxu0 %v482
        %734 = vmatmul.mubr.bf16.gmra.mxu0 %v481
        %v735 = vpop.f32.mrf.mxu0
        %v736 = vadd.f32 0.0, %v735
        %v737 = vpop.f32.mrf.mxu0
        %v738 = vpop.f32.mrf.mxu0
        %v739 = vadd.f32 0.0, %v738
        %v740 = vpop.f32.mrf.mxu0
        %741 = vmatprep.mubr.bf16.mxu0 %v484
        %742 = vmatmul.mubr.bf16.gmra.mxu0 %v483
        %v743 = vpop.f32.mrf.mxu0
        %v744 = vadd.f32 0.0, %v743
        %v745 = vpop.f32.mrf.mxu0
        %v746 = vpop.f32.mrf.mxu0
        %v747 = vadd.f32 0.0, %v746
        %v748 = vpop.f32.mrf.mxu0
        %749 = vmatprep.mubr.bf16.mxu0 %v486
        %750 = vmatmul.mubr.bf16.gmra.mxu0 %v485
        %v751 = vpop.f32.mrf.mxu0
        %v752 = vadd.f32 0.0, %v751
        %v753 = vpop.f32.mrf.mxu0
        %v754 = vpop.f32.mrf.mxu0
        %v755 = vadd.f32 0.0, %v754
        %v756 = vpop.f32.mrf.mxu0
        %757 = vmatprep.mubr.bf16.mxu0 %v488
        %758 = vmatmul.mubr.bf16.gmra.mxu0 %v487
        %v759 = vpop.f32.mrf.mxu0
        %v760 = vadd.f32 0.0, %v759
        %v761 = vpop.f32.mrf.mxu0
        %v762 = vpop.f32.mrf.mxu0
        %v763 = vadd.f32 0.0, %v762
        %v764 = vpop.f32.mrf.mxu0
        %765 = vmatprep.mubr.bf16.mxu0 %v490
        %766 = vmatmul.mubr.bf16.gmra.mxu0 %v489
        %v767 = vpop.f32.mrf.mxu0
        %v768 = vadd.f32 0.0, %v767
        %v769 = vpop.f32.mrf.mxu0
        %v770 = vpop.f32.mrf.mxu0
        %v771 = vadd.f32 0.0, %v770
        %v772 = vpop.f32.mrf.mxu0
        %773 = vmatprep.mubr.bf16.mxu0 %v492
        %774 = vmatmul.mubr.bf16.gmra.mxu0 %v491
        %v775 = vpop.f32.mrf.mxu0
        %v776 = vadd.f32 0.0, %v775
        %v777 = vpop.f32.mrf.mxu0
        %v778 = vpop.f32.mrf.mxu0
        %v779 = vadd.f32 0.0, %v778
        %v780 = vpop.f32.mrf.mxu0
        %781 = vdwg.mxu0
        %v782 = vadd.f32 %v269, %v656
        %v783 = vadd.f32 %v270, %v659
        %v784 = vadd.f32 %v271, %v664
        %v785 = vadd.f32 %v272, %v667
        %v786 = vadd.f32 %v273, %v672
        %v787 = vadd.f32 %v274, %v675
        %v788 = vadd.f32 %v275, %v680
        %v789 = vadd.f32 %v276, %v683
        %v790 = vadd.f32 %v277, %v688
        %v791 = vadd.f32 %v278, %v691
        %v792 = vadd.f32 %v279, %v696
        %v793 = vadd.f32 %v280, %v699
        %v794 = vadd.f32 %v281, %v704
        %v795 = vadd.f32 %v282, %v707
        %v796 = vadd.f32 %v283, %v712
        %v797 = vadd.f32 %v284, %v715
        %v798 = vadd.f32 %v285, %v720
        %v799 = vadd.f32 %v286, %v723
        %v800 = vadd.f32 %v287, %v728
        %v801 = vadd.f32 %v288, %v731
        %v802 = vadd.f32 %v289, %v736
        %v803 = vadd.f32 %v290, %v739
        %v804 = vadd.f32 %v291, %v744
        %v805 = vadd.f32 %v292, %v747
        %v806 = vadd.f32 %v293, %v752
        %v807 = vadd.f32 %v294, %v755
        %v808 = vadd.f32 %v295, %v760
        %v809 = vadd.f32 %v296, %v763
        %v810 = vadd.f32 %v297, %v768
        %v811 = vadd.f32 %v298, %v771
        %v812 = vadd.f32 %v299, %v776
        %v813 = vadd.f32 %v300, %v779
        %vm814 = vcmask 523264
        %815 = vst.msk [vmem:[#allocation2] sm:$0xff] %vm814, %v782
        %816 = vst.msk [vmem:[#allocation2 + $0x8] sm:$0xff] %vm814, %v783
        %817 = vst.msk [vmem:[#allocation2 + $0x10] sm:$0xff] %vm814, %v784
        %818 = vst.msk [vmem:[#allocation2 + $0x18] sm:$0xff] %vm814, %v785
        %819 = vst.msk [vmem:[#allocation2 + $0x20] sm:$0xff] %vm814, %v786
        %820 = vst.msk [vmem:[#allocation2 + $0x28] sm:$0xff] %vm814, %v787
        %821 = vst.msk [vmem:[#allocation2 + $0x30] sm:$0xff] %vm814, %v788
        %822 = vst.msk [vmem:[#allocation2 + $0x38] sm:$0xff] %vm814, %v789
        %823 = vst.msk [vmem:[#allocation2 + $0x40] sm:$0xff] %vm814, %v790
        %824 = vst.msk [vmem:[#allocation2 + $0x48] sm:$0xff] %vm814, %v791
        %825 = vst.msk [vmem:[#allocation2 + $0x50] sm:$0xff] %vm814, %v792
        %826 = vst.msk [vmem:[#allocation2 + $0x58] sm:$0xff] %vm814, %v793
        %827 = vst.msk [vmem:[#allocation2 + $0x60] sm:$0xff] %vm814, %v794
        %828 = vst.msk [vmem:[#allocation2 + $0x68] sm:$0xff] %vm814, %v795
        %829 = vst.msk [vmem:[#allocation2 + $0x70] sm:$0xff] %vm814, %v796
        %830 = vst.msk [vmem:[#allocation2 + $0x78] sm:$0xff] %vm814, %v797
        %831 = vst.msk [vmem:[#allocation2 + $0x80] sm:$0xff] %vm814, %v798
        %832 = vst.msk [vmem:[#allocation2 + $0x88] sm:$0xff] %vm814, %v799
        %833 = vst.msk [vmem:[#allocation2 + $0x90] sm:$0xff] %vm814, %v800
        %834 = vst.msk [vmem:[#allocation2 + $0x98] sm:$0xff] %vm814, %v801
        %835 = vst.msk [vmem:[#allocation2 + $0xa0] sm:$0xff] %vm814, %v802
        %836 = vst.msk [vmem:[#allocation2 + $0xa8] sm:$0xff] %vm814, %v803
        %837 = vst.msk [vmem:[#allocation2 + $0xb0] sm:$0xff] %vm814, %v804
        %838 = vst.msk [vmem:[#allocation2 + $0xb8] sm:$0xff] %vm814, %v805
        %839 = vst.msk [vmem:[#allocation2 + $0xc0] sm:$0xff] %vm814, %v806
        %840 = vst.msk [vmem:[#allocation2 + $0xc8] sm:$0xff] %vm814, %v807
        %841 = vst.msk [vmem:[#allocation2 + $0xd0] sm:$0xff] %vm814, %v808
        %842 = vst.msk [vmem:[#allocation2 + $0xd8] sm:$0xff] %vm814, %v809
        %843 = vst.msk [vmem:[#allocation2 + $0xe0] sm:$0xff] %vm814, %v810
        %844 = vst.msk [vmem:[#allocation2 + $0xe8] sm:$0xff] %vm814, %v811
        %845 = vst.msk [vmem:[#allocation2 + $0xf0] sm:$0xff] %vm814, %v812
        %846 = vst.msk [vmem:[#allocation2 + $0xf8] sm:$0xff] %vm814, %v813
        %p847 = scmp.eq.s32.totalorder %s25, 1
        // Predicated region
        $region41: #{tpu_custom_call.1} parent=31 // pred_check
          %p848 = pneg %p847
        $region42: #{tpu_custom_call.1} parent=31 // pred_check_branch
          %850 = sbr.rel (%p848) target = $region44
        $region43: #{tpu_custom_call.1} parent=31 // pred_region
          %v851 = vld [vmem:[#allocation2] sm:$0xff]
          %v852 = vld [vmem:[#allocation2 + $0x8] sm:$0xff]
          %v853 = vld [vmem:[#allocation2 + $0x10] sm:$0xff]
          %v854 = vld [vmem:[#allocation2 + $0x18] sm:$0xff]
          %v855 = vld [vmem:[#allocation2 + $0x20] sm:$0xff]
          %v856 = vld [vmem:[#allocation2 + $0x28] sm:$0xff]
          %v857 = vld [vmem:[#allocation2 + $0x30] sm:$0xff]
          %v858 = vld [vmem:[#allocation2 + $0x38] sm:$0xff]
          %v859 = vld [vmem:[#allocation2 + $0x40] sm:$0xff]
          %v860 = vld [vmem:[#allocation2 + $0x48] sm:$0xff]
          %v861 = vld [vmem:[#allocation2 + $0x50] sm:$0xff]
          %v862 = vld [vmem:[#allocation2 + $0x58] sm:$0xff]
          %v863 = vld [vmem:[#allocation2 + $0x60] sm:$0xff]
          %v864 = vld [vmem:[#allocation2 + $0x68] sm:$0xff]
          %v865 = vld [vmem:[#allocation2 + $0x70] sm:$0xff]
          %v866 = vld [vmem:[#allocation2 + $0x78] sm:$0xff]
          %v867 = vld [vmem:[#allocation2 + $0x80] sm:$0xff]
          %v868 = vld [vmem:[#allocation2 + $0x88] sm:$0xff]
          %v869 = vld [vmem:[#allocation2 + $0x90] sm:$0xff]
          %v870 = vld [vmem:[#allocation2 + $0x98] sm:$0xff]
          %v871 = vld [vmem:[#allocation2 + $0xa0] sm:$0xff]
          %v872 = vld [vmem:[#allocation2 + $0xa8] sm:$0xff]
          %v873 = vld [vmem:[#allocation2 + $0xb0] sm:$0xff]
          %v874 = vld [vmem:[#allocation2 + $0xb8] sm:$0xff]
          %v875 = vld [vmem:[#allocation2 + $0xc0] sm:$0xff]
          %v876 = vld [vmem:[#allocation2 + $0xc8] sm:$0xff]
          %v877 = vld [vmem:[#allocation2 + $0xd0] sm:$0xff]
          %v878 = vld [vmem:[#allocation2 + $0xd8] sm:$0xff]
          %v879 = vld [vmem:[#allocation2 + $0xe0] sm:$0xff]
          %v880 = vld [vmem:[#allocation2 + $0xe8] sm:$0xff]
          %v881 = vld [vmem:[#allocation2 + $0xf0] sm:$0xff]
          %v882 = vld [vmem:[#allocation2 + $0xf8] sm:$0xff]
          %v883 = vld [vmem:[%s1] sm:$0xff]
          %v884 = vld [vmem:[%s1 + $0x8] sm:$0xff]
          %v885 = vld [vmem:[%s1 + $0x10] sm:$0xff]
          %v886 = vld [vmem:[%s1 + $0x18] sm:$0xff]
          %v887 = vld [vmem:[%s1 + $0x20] sm:$0xff]
          %v888 = vld [vmem:[%s1 + $0x28] sm:$0xff]
          %v889 = vld [vmem:[%s1 + $0x30] sm:$0xff]
          %v890 = vld [vmem:[%s1 + $0x38] sm:$0xff]
          %v892 = vsel %vm814, %v851, 0
          %v895 = vsel %vm814, %v852, 0
          %v898 = vsel %vm814, %v853, 0
          %v901 = vsel %vm814, %v854, 0
          %v904 = vsel %vm814, %v855, 0
          %v907 = vsel %vm814, %v856, 0
          %v910 = vsel %vm814, %v857, 0
          %v913 = vsel %vm814, %v858, 0
          %v916 = vsel %vm814, %v859, 0
          %v919 = vsel %vm814, %v860, 0
          %v922 = vsel %vm814, %v861, 0
          %v925 = vsel %vm814, %v862, 0
          %v928 = vsel %vm814, %v863, 0
          %v931 = vsel %vm814, %v864, 0
          %v934 = vsel %vm814, %v865, 0
          %v937 = vsel %vm814, %v866, 0
          %v940 = vsel %vm814, %v867, 0
          %v943 = vsel %vm814, %v868, 0
          %v946 = vsel %vm814, %v869, 0
          %v949 = vsel %vm814, %v870, 0
          %v952 = vsel %vm814, %v871, 0
          %v955 = vsel %vm814, %v872, 0
          %v958 = vsel %vm814, %v873, 0
          %v961 = vsel %vm814, %v874, 0
          %v964 = vsel %vm814, %v875, 0
          %v967 = vsel %vm814, %v876, 0
          %v970 = vsel %vm814, %v877, 0
          %v973 = vsel %vm814, %v878, 0
          %v976 = vsel %vm814, %v879, 0
          %v979 = vsel %vm814, %v880, 0
          %v982 = vsel %vm814, %v881, 0
          %v985 = vsel %vm814, %v882, 0
          %987 = vmatprep.subr.mxu0 0.0
          %988 = vmatpush1.msra.mxu0 0.0
          %989 = vmatprep.subr.mxu0 0.0
          %990 = vmatpush1.msra.mxu0 0.0
          %991 = vmatprep.subr.mxu0 0.0
          %992 = vmatpush1.msra.mxu0 0.0
          %993 = vmatprep.subr.mxu0 0.0
          %994 = vmatpush1.msra.mxu0 0.0
          %995 = vmatprep.subr.mxu0 0.0
          %996 = vmatpush1.msra.mxu0 0.0
          %997 = vmatprep.subr.mxu0 0.0
          %998 = vmatpush1.msra.mxu0 0.0
          %999 = vmatprep.subr.mxu0 0.0
          %1000 = vmatpush1.msra.mxu0 0.0
          %1001 = vmatprep.subr.mxu0 0.0
          %1002 = vmatpush1.msra.mxu0 0.0
          %1003 = vmatprep.subr.mxu0 0.0
          %1004 = vmatpush1.msra.mxu0 %v890
          %1005 = vmatprep.subr.mxu0 0.0
          %1006 = vmatpush1.msra.mxu0 %v889
          %1007 = vmatprep.subr.mxu0 0.0
          %1008 = vmatpush1.msra.mxu0 %v888
          %1009 = vmatprep.subr.mxu0 0.0
          %1010 = vmatpush1.msra.mxu0 %v887
          %1011 = vmatprep.subr.mxu0 0.0
          %1012 = vmatpush1.msra.mxu0 %v886
          %1013 = vmatprep.subr.mxu0 0.0
          %1014 = vmatpush1.msra.mxu0 %v885
          %1015 = vmatprep.subr.mxu0 0.0
          %1016 = vmatpush1.msra.mxu0 %v884
          %1017 = vmatprep.subr.mxu0 0.0
          %1018 = vmatpush1.msra.mxu0 %v883
          %1019 = vmatprep.subr.mxu0 0.0
          %1020 = vmatpush2.msra.mxu0 0.0
          %1021 = vmatprep.subr.mxu0 0.0
          %1022 = vmatpush2.msra.mxu0 0.0
          %1023 = vmatprep.subr.mxu0 0.0
          %1024 = vmatpush2.msra.mxu0 0.0
          %1025 = vmatprep.subr.mxu0 0.0
          %1026 = vmatpush2.msra.mxu0 0.0
          %1027 = vmatprep.subr.mxu0 0.0
          %1028 = vmatpush2.msra.mxu0 0.0
          %1029 = vmatprep.subr.mxu0 0.0
          %1030 = vmatpush2.msra.mxu0 0.0
          %1031 = vmatprep.subr.mxu0 0.0
          %1032 = vmatpush2.msra.mxu0 0.0
          %1033 = vmatprep.subr.mxu0 0.0
          %1034 = vmatpush2.msra.mxu0 0.0
          %1035 = vmatprep.subr.mxu0 0.0
          %1036 = vmatpush2.msra.mxu0 0.0
          %1037 = vmatprep.subr.mxu0 0.0
          %1038 = vmatpush2.msra.mxu0 0.0
          %1039 = vmatprep.subr.mxu0 0.0
          %1040 = vmatpush2.msra.mxu0 0.0
          %1041 = vmatprep.subr.mxu0 0.0
          %1042 = vmatpush2.msra.mxu0 0.0
          %1043 = vmatprep.subr.mxu0 0.0
          %1044 = vmatpush2.msra.mxu0 0.0
          %1045 = vmatprep.subr.mxu0 0.0
          %1046 = vmatpush2.msra.mxu0 0.0
          %1047 = vmatprep.subr.mxu0 0.0
          %1048 = vmatpush2.msra.mxu0 0.0
          %1049 = vmatprep.subr.mxu0 0.0
          %1050 = vmatpush2.msra.mxu0 0.0
          %1051 = vmatprep.mubr.f32.mxu0 0.0
          %1052 = vmatmul.mubr.f32.gmra.mxu0 %v892
          %v1053 = vpop.f32.mrf.mxu0
          %v1054 = vadd.f32 0.0, %v1053
          %v1055 = vpop.f32.mrf.mxu0
          %1056 = vmatprep.mubr.f32.mxu0 0.0
          %1057 = vmatmul.mubr.f32.gmra.mxu0 %v895
          %v1058 = vpop.f32.mrf.mxu0
          %v1059 = vadd.f32 0.0, %v1058
          %v1060 = vpop.f32.mrf.mxu0
          %1061 = vmatprep.mubr.f32.mxu0 0.0
          %1062 = vmatmul.mubr.f32.gmra.mxu0 %v898
          %v1063 = vpop.f32.mrf.mxu0
          %v1064 = vadd.f32 0.0, %v1063
          %v1065 = vpop.f32.mrf.mxu0
          %1066 = vmatprep.mubr.f32.mxu0 0.0
          %1067 = vmatmul.mubr.f32.gmra.mxu0 %v901
          %v1068 = vpop.f32.mrf.mxu0
          %v1069 = vadd.f32 0.0, %v1068
          %v1070 = vpop.f32.mrf.mxu0
          %1071 = vmatprep.mubr.f32.mxu0 0.0
          %1072 = vmatmul.mubr.f32.gmra.mxu0 %v904
          %v1073 = vpop.f32.mrf.mxu0
          %v1074 = vadd.f32 0.0, %v1073
          %v1075 = vpop.f32.mrf.mxu0
          %1076 = vmatprep.mubr.f32.mxu0 0.0
          %1077 = vmatmul.mubr.f32.gmra.mxu0 %v907
          %v1078 = vpop.f32.mrf.mxu0
          %v1079 = vadd.f32 0.0, %v1078
          %v1080 = vpop.f32.mrf.mxu0
          %1081 = vmatprep.mubr.f32.mxu0 0.0
          %1082 = vmatmul.mubr.f32.gmra.mxu0 %v910
          %v1083 = vpop.f32.mrf.mxu0
          %v1084 = vadd.f32 0.0, %v1083
          %v1085 = vpop.f32.mrf.mxu0
          %1086 = vmatprep.mubr.f32.mxu0 0.0
          %1087 = vmatmul.mubr.f32.gmra.mxu0 %v913
          %v1088 = vpop.f32.mrf.mxu0
          %v1089 = vadd.f32 0.0, %v1088
          %v1090 = vpop.f32.mrf.mxu0
          %1091 = vmatprep.mubr.f32.mxu0 0.0
          %1092 = vmatmul.mubr.f32.gmra.mxu0 %v916
          %v1093 = vpop.f32.mrf.mxu0
          %v1094 = vadd.f32 0.0, %v1093
          %v1095 = vpop.f32.mrf.mxu0
          %1096 = vmatprep.mubr.f32.mxu0 0.0
          %1097 = vmatmul.mubr.f32.gmra.mxu0 %v919
          %v1098 = vpop.f32.mrf.mxu0
          %v1099 = vadd.f32 0.0, %v1098
          %v1100 = vpop.f32.mrf.mxu0
          %1101 = vmatprep.mubr.f32.mxu0 0.0
          %1102 = vmatmul.mubr.f32.gmra.mxu0 %v922
          %v1103 = vpop.f32.mrf.mxu0
          %v1104 = vadd.f32 0.0, %v1103
          %v1105 = vpop.f32.mrf.mxu0
          %1106 = vmatprep.mubr.f32.mxu0 0.0
          %1107 = vmatmul.mubr.f32.gmra.mxu0 %v925
          %v1108 = vpop.f32.mrf.mxu0
          %v1109 = vadd.f32 0.0, %v1108
          %v1110 = vpop.f32.mrf.mxu0
          %1111 = vmatprep.mubr.f32.mxu0 0.0
          %1112 = vmatmul.mubr.f32.gmra.mxu0 %v928
          %v1113 = vpop.f32.mrf.mxu0
          %v1114 = vadd.f32 0.0, %v1113
          %v1115 = vpop.f32.mrf.mxu0
          %1116 = vmatprep.mubr.f32.mxu0 0.0
          %1117 = vmatmul.mubr.f32.gmra.mxu0 %v931
          %v1118 = vpop.f32.mrf.mxu0
          %v1119 = vadd.f32 0.0, %v1118
          %v1120 = vpop.f32.mrf.mxu0
          %1121 = vmatprep.mubr.f32.mxu0 0.0
          %1122 = vmatmul.mubr.f32.gmra.mxu0 %v934
          %v1123 = vpop.f32.mrf.mxu0
          %v1124 = vadd.f32 0.0, %v1123
          %v1125 = vpop.f32.mrf.mxu0
          %1126 = vmatprep.mubr.f32.mxu0 0.0
          %1127 = vmatmul.mubr.f32.gmra.mxu0 %v937
          %v1128 = vpop.f32.mrf.mxu0
          %v1129 = vadd.f32 0.0, %v1128
          %v1130 = vpop.f32.mrf.mxu0
          %1131 = vmatprep.mubr.f32.mxu0 0.0
          %1132 = vmatmul.mubr.f32.gmra.mxu0 %v940
          %v1133 = vpop.f32.mrf.mxu0
          %v1134 = vadd.f32 0.0, %v1133
          %v1135 = vpop.f32.mrf.mxu0
          %1136 = vmatprep.mubr.f32.mxu0 0.0
          %1137 = vmatmul.mubr.f32.gmra.mxu0 %v943
          %v1138 = vpop.f32.mrf.mxu0
          %v1139 = vadd.f32 0.0, %v1138
          %v1140 = vpop.f32.mrf.mxu0
          %1141 = vmatprep.mubr.f32.mxu0 0.0
          %1142 = vmatmul.mubr.f32.gmra.mxu0 %v946
          %v1143 = vpop.f32.mrf.mxu0
          %v1144 = vadd.f32 0.0, %v1143
          %v1145 = vpop.f32.mrf.mxu0
          %1146 = vmatprep.mubr.f32.mxu0 0.0
          %1147 = vmatmul.mubr.f32.gmra.mxu0 %v949
          %v1148 = vpop.f32.mrf.mxu0
          %v1149 = vadd.f32 0.0, %v1148
          %v1150 = vpop.f32.mrf.mxu0
          %1151 = vmatprep.mubr.f32.mxu0 0.0
          %1152 = vmatmul.mubr.f32.gmra.mxu0 %v952
          %v1153 = vpop.f32.mrf.mxu0
          %v1154 = vadd.f32 0.0, %v1153
          %v1155 = vpop.f32.mrf.mxu0
          %1156 = vmatprep.mubr.f32.mxu0 0.0
          %1157 = vmatmul.mubr.f32.gmra.mxu0 %v955
          %v1158 = vpop.f32.mrf.mxu0
          %v1159 = vadd.f32 0.0, %v1158
          %v1160 = vpop.f32.mrf.mxu0
          %1161 = vmatprep.mubr.f32.mxu0 0.0
          %1162 = vmatmul.mubr.f32.gmra.mxu0 %v958
          %v1163 = vpop.f32.mrf.mxu0
          %v1164 = vadd.f32 0.0, %v1163
          %v1165 = vpop.f32.mrf.mxu0
          %1166 = vmatprep.mubr.f32.mxu0 0.0
          %1167 = vmatmul.mubr.f32.gmra.mxu0 %v961
          %v1168 = vpop.f32.mrf.mxu0
          %v1169 = vadd.f32 0.0, %v1168
          %v1170 = vpop.f32.mrf.mxu0
          %1171 = vmatprep.mubr.f32.mxu0 0.0
          %1172 = vmatmul.mubr.f32.gmra.mxu0 %v964
          %v1173 = vpop.f32.mrf.mxu0
          %v1174 = vadd.f32 0.0, %v1173
          %v1175 = vpop.f32.mrf.mxu0
          %1176 = vmatprep.mubr.f32.mxu0 0.0
          %1177 = vmatmul.mubr.f32.gmra.mxu0 %v967
          %v1178 = vpop.f32.mrf.mxu0
          %v1179 = vadd.f32 0.0, %v1178
          %v1180 = vpop.f32.mrf.mxu0
          %1181 = vmatprep.mubr.f32.mxu0 0.0
          %1182 = vmatmul.mubr.f32.gmra.mxu0 %v970
          %v1183 = vpop.f32.mrf.mxu0
          %v1184 = vadd.f32 0.0, %v1183
          %v1185 = vpop.f32.mrf.mxu0
          %1186 = vmatprep.mubr.f32.mxu0 0.0
          %1187 = vmatmul.mubr.f32.gmra.mxu0 %v973
          %v1188 = vpop.f32.mrf.mxu0
          %v1189 = vadd.f32 0.0, %v1188
          %v1190 = vpop.f32.mrf.mxu0
          %1191 = vmatprep.mubr.f32.mxu0 0.0
          %1192 = vmatmul.mubr.f32.gmra.mxu0 %v976
          %v1193 = vpop.f32.mrf.mxu0
          %v1194 = vadd.f32 0.0, %v1193
          %v1195 = vpop.f32.mrf.mxu0
          %1196 = vmatprep.mubr.f32.mxu0 0.0
          %1197 = vmatmul.mubr.f32.gmra.mxu0 %v979
          %v1198 = vpop.f32.mrf.mxu0
          %v1199 = vadd.f32 0.0, %v1198
          %v1200 = vpop.f32.mrf.mxu0
          %1201 = vmatprep.mubr.f32.mxu0 0.0
          %1202 = vmatmul.mubr.f32.gmra.mxu0 %v982
          %v1203 = vpop.f32.mrf.mxu0
          %v1204 = vadd.f32 0.0, %v1203
          %v1205 = vpop.f32.mrf.mxu0
          %1206 = vmatprep.mubr.f32.mxu0 0.0
          %1207 = vmatmul.mubr.f32.gmra.mxu0 %v985
          %v1208 = vpop.f32.mrf.mxu0
          %v1209 = vadd.f32 0.0, %v1208
          %v1210 = vpop.f32.mrf.mxu0
          %1211 = vdwg.mxu0
          %v1212 = vtanh.pop %v1054
          %v1213 = vtanh.pop %v1059
          %v1214 = vtanh.pop %v1064
          %v1215 = vtanh.pop %v1069
          %v1216 = vtanh.pop %v1074
          %v1217 = vtanh.pop %v1079
          %v1218 = vtanh.pop %v1084
          %v1219 = vtanh.pop %v1089
          %v1220 = vtanh.pop %v1094
          %v1221 = vtanh.pop %v1099
          %v1222 = vtanh.pop %v1104
          %v1223 = vtanh.pop %v1109
          %v1224 = vtanh.pop %v1114
          %v1225 = vtanh.pop %v1119
          %v1226 = vtanh.pop %v1124
          %v1227 = vtanh.pop %v1129
          %v1228 = vtanh.pop %v1134
          %v1229 = vtanh.pop %v1139
          %v1230 = vtanh.pop %v1144
          %v1231 = vtanh.pop %v1149
          %v1232 = vtanh.pop %v1154
          %v1233 = vtanh.pop %v1159
          %v1234 = vtanh.pop %v1164
          %v1235 = vtanh.pop %v1169
          %v1236 = vtanh.pop %v1174
          %v1237 = vtanh.pop %v1179
          %v1238 = vtanh.pop %v1184
          %v1239 = vtanh.pop %v1189
          %v1240 = vtanh.pop %v1194
          %v1241 = vtanh.pop %v1199
          %v1242 = vtanh.pop %v1204
          %v1243 = vtanh.pop %v1209
          %1244 = vst [vmem:[%s221] sm:$0xff] %v1212
          %1245 = vst [vmem:[%s221 + $0x8] sm:$0xff] %v1213
          %1246 = vst [vmem:[%s221 + $0x10] sm:$0xff] %v1214
          %1247 = vst [vmem:[%s221 + $0x18] sm:$0xff] %v1215
          %1248 = vst [vmem:[%s221 + $0x20] sm:$0xff] %v1216
          %1249 = vst [vmem:[%s221 + $0x28] sm:$0xff] %v1217
          %1250 = vst [vmem:[%s221 + $0x30] sm:$0xff] %v1218
          %1251 = vst [vmem:[%s221 + $0x38] sm:$0xff] %v1219
          %1252 = vst [vmem:[%s221 + $0x40] sm:$0xff] %v1220
          %1253 = vst [vmem:[%s221 + $0x48] sm:$0xff] %v1221
          %1254 = vst [vmem:[%s221 + $0x50] sm:$0xff] %v1222
          %1255 = vst [vmem:[%s221 + $0x58] sm:$0xff] %v1223
          %1256 = vst [vmem:[%s221 + $0x60] sm:$0xff] %v1224
          %1257 = vst [vmem:[%s221 + $0x68] sm:$0xff] %v1225
          %1258 = vst [vmem:[%s221 + $0x70] sm:$0xff] %v1226
          %1259 = vst [vmem:[%s221 + $0x78] sm:$0xff] %v1227
          %1260 = vst [vmem:[%s221 + $0x80] sm:$0xff] %v1228
          %1261 = vst [vmem:[%s221 + $0x88] sm:$0xff] %v1229
          %1262 = vst [vmem:[%s221 + $0x90] sm:$0xff] %v1230
          %1263 = vst [vmem:[%s221 + $0x98] sm:$0xff] %v1231
          %1264 = vst [vmem:[%s221 + $0xa0] sm:$0xff] %v1232
          %1265 = vst [vmem:[%s221 + $0xa8] sm:$0xff] %v1233
          %1266 = vst [vmem:[%s221 + $0xb0] sm:$0xff] %v1234
          %1267 = vst [vmem:[%s221 + $0xb8] sm:$0xff] %v1235
          %1268 = vst [vmem:[%s221 + $0xc0] sm:$0xff] %v1236
          %1269 = vst [vmem:[%s221 + $0xc8] sm:$0xff] %v1237
          %1270 = vst [vmem:[%s221 + $0xd0] sm:$0xff] %v1238
          %1271 = vst [vmem:[%s221 + $0xd8] sm:$0xff] %v1239
          %1272 = vst [vmem:[%s221 + $0xe0] sm:$0xff] %v1240
          %1273 = vst [vmem:[%s221 + $0xe8] sm:$0xff] %v1241
          %1274 = vst [vmem:[%s221 + $0xf0] sm:$0xff] %v1242
          %1275 = vst [vmem:[%s221 + $0xf8] sm:$0xff] %v1243
        $region44: #{tpu_custom_call.1} parent=31 // pred_fallthru
          _
        %s1276 = sand.u32 %s115, 1
        %s1277 = scalar_lea.sflag [#allocation5], %s1276
        %s1278 = sand.u32 %s115, 1
        %s1279 = smul.addr %s1278, 256
        %s1280 = scalar_lea.vmem [#allocation6], %s1279
        // Predicated region
        $region45: #{tpu_custom_call.1} parent=31 // pred_check
          %p1281 = pneg %p125
        $region46: #{tpu_custom_call.1} parent=31 // pred_check_branch
          %1283 = sbr.rel (%p1281) target = $region48
        $region47: #{tpu_custom_call.1} parent=31 // pred_region
          %s1284 = smul.u32 32, %s24
          %s1286 = ssub.s32 4096, 4096
          %1287 = vsyncadd %s1277, %s1286
          %s1288 = smul.addr %s1284, 128
          %s1289 = scalar_lea.hbm %s3, %s1288
          %s1290 = sshll.u32 %s1280, 4
          %s1291 = int_to_ptr.vmem [resolvable:$true] %s1290
          %1296 = dma.vmem_to_hbm [thread:$0]  %s1291, 4096, %s1289, %s1277, 128, 128, 8
        $region48: #{tpu_custom_call.1} parent=31 // pred_fallthru
          _
      $region32: #{tpu_custom_call.1} parent=5 // pred_fallthru
        _
      %p1297 = scmp.le.s32.totalorder 2, %s15
      // Predicated region
      $region49: #{tpu_custom_call.1} parent=5 // pred_check
        %p1298 = pneg %p1297
      $region50: #{tpu_custom_call.1} parent=5 // pred_check_branch
        %1300 = sbr.rel (%p1298) target = $region52
      $region51: #{tpu_custom_call.1} parent=5 // pred_region
        %s1301 = ssub.s32 %s15, 2
        // Predicated region
        $region53: #{tpu_custom_call.1} parent=51 // pred_check
          %p1302 = pneg %p131
        $region54: #{tpu_custom_call.1} parent=51 // pred_check_branch
          %1304 = sbr.rel (%p1302) target = $region56
        $region55: #{tpu_custom_call.1} parent=51 // pred_region
          %s1305 = sand.u32 %s116, 1
          %s1306 = scalar_lea.sflag [#allocation5], %s1305
          %s1307 = sand.u32 %s116, 1
          %s1308 = smul.addr %s1307, 256
          %s1309 = scalar_lea.vmem [#allocation6], %s1308
          %1310 = dma.done %s1306, 4096
        $region56: #{tpu_custom_call.1} parent=51 // pred_fallthru
          _
      $region52: #{tpu_custom_call.1} parent=5 // pred_fallthru
        _
    $region6: #{tpu_custom_call.1} parent=1 // loop_footer
      %s19 = sadd.s32 1, %s15
    $region7: #{tpu_custom_call.1} parent=1 // loop_footer_branch
      %14 = sbr.rel target = $region3
    $region8: #{tpu_custom_call.1} parent=1 // loop_exit
      _
    %1311 = vsyncpa [#allocation4], 1
    %s1312 = scalar_lea.sflag [#allocation4], 1
    %1313 = vsyncpa %s1312, 1
    %1314 = vsyncpa [#allocation5], 1
    %s1315 = scalar_lea.sflag [#allocation5], 1
    %1316 = vsyncpa %s1315, 1

</llo_original>
